<compile_context>
chip_gen: v7x
topology: tpu7x:2x2x1
jax: 0.10.0
libtpu: 0.0.40
codegen_flags: <defaults>
</compile_context>

<pallas_src>
import jax
import jax.numpy as jnp
from jax.experimental import pallas as pl
from jax.experimental.pallas import tpu as pltpu


def _cdiv(a, b):
    return (a + b - 1) // b


def _round_up(x, m):
    return ((x + m - 1) // m) * m


def _device_kind():
    try:
        return jax.devices()[0].device_kind.lower()
    except Exception:
        return ""


def _default_feature_align():
    kind = _device_kind()
    if any(v in kind for v in ("v2", "v3", "v4", "v5")):
        return 128          # 128x128 MXU tiles
    return 256              # v6e / v7x: 2x 256x256 MXU


def _vmem_cap_bytes():
    kind = _device_kind()
    if "v7" in kind:
        return 56 << 20     # v7x: 64 MiB physical VMEM per TensorCore
    return 100 << 20        # v5e / v6e: 128 MiB physical VMEM


def _mlp_kernel(x_ref, w1_ref, b1_ref, w2_ref, b2_ref, o_ref, h_ref):
    """o = relu(x @ w1 + b1) @ w2 + b2; h cached across the j (D_out) axis."""
    # fc_1 runs once per batch tile (first j step); result cached in VMEM
    # scratch and reused by every output-feature tile (no MXU recompute).
    @pl.when(pl.program_id(1) == 0)
    def _():
        h = jnp.dot(x_ref[...], w1_ref[...], preferred_element_type=jnp.float32)
        h_ref[...] = jnp.maximum(h + b1_ref[...], 0.0)   # f32 bias + ReLU (VPU)

    # dropout: identity at inference.
    out = jnp.dot(h_ref[...].astype(w2_ref.dtype), w2_ref[...],
                  preferred_element_type=jnp.float32)
    o_ref[...] = (out + b2_ref[...]).astype(o_ref.dtype)


def prepare_classification_params(w1, b1, w2, b2, *, mxu_dtype=None,
                                  feature_align=None):
    """Pad / cast the weights ONCE (hoisted out of the per-call path).

    w1: (D_in, M), b1: (M,), w2: (M, D_out), b2: (D_out,).
    Weights are the transpose of PyTorch nn.Linear.weight, i.e. stored (in, out).
    mxu_dtype: optional dtype (e.g. jnp.bfloat16) fed to the MXU (f32 accum).
    """
    if feature_align is None:
        feature_align = _default_feature_align()
    D_in, M = w1.shape
    D_out = w2.shape[1]
    mm_dtype = jnp.dtype(mxu_dtype) if mxu_dtype is not None else jnp.dtype(w1.dtype)

    D_in_p = _round_up(D_in, feature_align)
    M_p = _round_up(M, feature_align)
    D_out_p = _round_up(D_out, feature_align)

    w1_p = jnp.zeros((D_in_p, M_p), mm_dtype).at[:D_in, :M].set(w1.astype(mm_dtype))
    w2_p = jnp.zeros((M_p, D_out_p), mm_dtype).at[:M, :D_out].set(w2.astype(mm_dtype))
    # Biases stay f32, shaped (1, N) (sublane x lane); broadcast in the epilogue.
    b1_p = jnp.zeros((1, M_p), jnp.float32).at[0, :M].set(b1.astype(jnp.float32))
    b2_p = jnp.zeros((1, D_out_p), jnp.float32).at[0, :D_out].set(
        b2.astype(jnp.float32))

    return {"w1": w1_p, "b1": b1_p, "w2": w2_p, "b2": b2_p,
            "dims": (D_in, M, D_out), "mm_dtype": mm_dtype}


def classification_layer_apply(x, params, *, tm=256, tn=1024):
    """Fused fc_2(relu(fc_1(x))) using pre-padded params (see prepare_...)."""
    w1_p, b1_p, w2_p, b2_p = params["w1"], params["b1"], params["w2"], params["b2"]
    D_in, _, D_out = params["dims"]
    mm_dtype = params["mm_dtype"]

    B = x.shape[0]
    assert x.shape[1] == D_in, "x last dim must match fc_1 input_dim"
    out_dtype = x.dtype
    D_in_p, M_p = w1_p.shape
    D_out_p = w2_p.shape[1]
    mm_isize = jnp.dtype(mm_dtype).itemsize
    out_isize = jnp.dtype(out_dtype).itemsize

    # ---- batch tiling: minimize padding; TM multiple of 8 -------------------
    B8 = _round_up(B, 8)
    n_b = _cdiv(B8, tm)
    TM = _round_up(_cdiv(B8, n_b), 8)
    # v7x megacore: give both TensorCores work on the parallel (batch) axis.
    if n_b == 1 and B8 >= 16 and "v7" in _device_kind():
        n_b = 2
        TM = _round_up(_cdiv(B8, 2), 8)
    B_p = n_b * TM

    # ---- D_out tiling: TN must divide D_out_p and be a multiple of 128 ------
    q = D_out_p // 128

    def next_divisor(n):
        while q % n != 0:
            n += 1
        return n

    n_n = next_divisor(max(1, _cdiv(D_out_p, tn)))
    TN = D_out_p // n_n

    # ---- size-derived VMEM budget; shrink tiles if over the device cap ------
    def vmem_needed(TM_, TN_, n_n_):
        w2_bufs = 1 if n_n_ == 1 else 2
        return (2 * TM_ * D_in_p * mm_isize            # x (double-buffered)
                + D_in_p * M_p * mm_isize              # w1 (single-buffered)
                + M_p * 4                              # b1
                + w2_bufs * (M_p * TN_ * mm_isize + TN_ * 4)
                + 2 * TM_ * TN_ * out_isize            # out (double-buffered)
                + TM_ * M_p * 4)                       # h scratch (f32)

    cap = _vmem_cap_bytes()
    while vmem_needed(TM, TN, n_n) > cap and n_n < q:
        n_n = next_divisor(n_n + 1)
        TN = D_out_p // n_n
    while vmem_needed(TM, TN, n_n) > cap and TM > 8:
        TM = max(8, _round_up(TM // 2, 8))
        n_b = _cdiv(B8, TM)
        B_p = n_b * TM
    # TODO(synk): if w1 alone exceeds VMEM (very large D_in*M), add a K-tiling
    # grid axis over D_in with an f32 accumulator instead of a resident w1.

    vmem_limit = int(min(cap, max(vmem_needed(TM, TN, n_n) + (4 << 20), 32 << 20)))

    # Per-call padding touches only the activation (weights already padded).
    x_p = jnp.zeros((B_p, D_in_p), mm_dtype).at[:B, :D_in].set(x.astype(mm_dtype))

    flops = 2 * B_p * (D_in_p * M_p + M_p * D_out_p)
    bytes_accessed = (B_p * D_in_p * mm_isize
                      + D_in_p * M_p * mm_isize
                      + n_b * (M_p * D_out_p * mm_isize + D_out_p * 4)
                      + M_p * 4
                      + B_p * D_out_p * out_isize)

    def build_specs(single_buffer_weights):
        def resident(shape):          # constant block index across whole grid
            if single_buffer_weights:
                return pl.BlockSpec(shape, lambda i, j: (0, 0),
                                    pipeline_mode=pl.Buffered(1))
            return pl.BlockSpec(shape, lambda i, j: (0, 0))

        def out_tiled(shape):         # varies only along j; constant if n_n==1
            if single_buffer_weights and n_n == 1:
                return pl.BlockSpec(shape, lambda i, j: (0, j),
                                    pipeline_mode=pl.Buffered(1))
            return pl.BlockSpec(shape, lambda i, j: (0, j))

        in_specs = [
            pl.BlockSpec((TM, D_in_p), lambda i, j: (i, 0)),   # x: batch-tiled
            resident((D_in_p, M_p)),                           # w1: resident
            resident((1, M_p)),                                # b1: resident
            out_tiled((M_p, TN)),                              # w2: D_out-tiled
            out_tiled((1, TN)),                                # b2: D_out-tiled
        ]
        out_spec = pl.BlockSpec((TM, TN), lambda i, j: (i, j))
        return in_specs, out_spec

    def run(single_buffer_weights):
        in_specs, out_spec = build_specs(single_buffer_weights)
        return pl.pallas_call(
            _mlp_kernel,
            out_shape=jax.ShapeDtypeStruct((B_p, D_out_p), out_dtype),
            grid=(n_b, n_n),
            in_specs=in_specs,
            out_specs=out_spec,
            scratch_shapes=[pltpu.VMEM((TM, M_p), jnp.float32)],  # cached h
            compiler_params=pltpu.CompilerParams(
                dimension_semantics=("parallel", "arbitrary"),
                vmem_limit_bytes=vmem_limit),
            cost_estimate=pl.CostEstimate(
                flops=flops, transcendentals=0, bytes_accessed=bytes_accessed),
        )(x_p, w1_p, b1_p, w2_p, b2_p)

    try:
        out_p = run(True)     # single-buffered resident weights (halves VMEM)
    except Exception:
        out_p = run(False)    # fallback if pl.Buffered(1) is not supported

    return out_p[:B, :D_out]


def classification_layer(x, w1, b1, w2, b2, *, mxu_dtype=None, tm=256, tn=1024):
    """One-shot convenience wrapper (pads weights per call; prefer prepare+apply)."""
    params = prepare_classification_params(w1, b1, w2, b2, mxu_dtype=mxu_dtype)
    return classification_layer_apply(x, params, tm=tm, tn=tn)


def _torch_linear_init(key, fan_in, fan_out, dtype=jnp.float32):
    """Deterministic nn.Linear-style init: U(-1/sqrt(fan_in), 1/sqrt(fan_in))."""
    kw, kb = jax.random.split(key)
    bound = 1.0 / (fan_in ** 0.5)
    # PyTorch stores weight as (out, in); we keep the transposed (in, out).
    w = jax.random.uniform(kw, (fan_in, fan_out), dtype, -bound, bound)
    b = jax.random.uniform(kb, (fan_out,), dtype, -bound, bound)
    return w, b


if __name__ == "__main__":
    key = jax.random.PRNGKey(0)
    k_x, k_fc1, k_fc2 = jax.random.split(key, 3)

    batch = 8
    input_dim = 32
    middle_dim = 64
    output_dim = 16

    x = jax.random.normal(k_x, (batch, input_dim), jnp.float32)
    w1, b1 = _torch_linear_init(k_fc1, input_dim, middle_dim)
    w2, b2 = _torch_linear_init(k_fc2, middle_dim, output_dim)

    # Reference in plain JAX (f32).
    ref = jnp.maximum(x @ w1 + b1, 0.0) @ w2 + b2

    # f32 path: weights padded once, numerically tight.
    params_f32 = prepare_classification_params(w1, b1, w2, b2)
    out_f32 = jax.block_until_ready(classification_layer_apply(x, params_f32))
    assert out_f32.shape == (batch, output_dim)
    assert jnp.allclose(out_f32, ref, atol=1e-5, rtol=1e-5)

    # bf16-fed MXU path (f32 accumulation): halves HBM/VMEM weight traffic and
    # roughly doubles MXU throughput on v5e/v6e/v7x; activation is downcast
    # before fc_2, so compare with a loose tolerance (explicit opt-in).
    params_bf16 = prepare_classification_params(w1, b1, w2, b2,
                                                mxu_dtype=jnp.bfloat16)
    out_bf16 = jax.block_until_ready(classification_layer_apply(x, params_bf16))
    assert out_bf16.shape == (batch, output_dim)
    assert jnp.allclose(out_bf16, ref, atol=5e-2, rtol=5e-2)

    print("KERNEL_OK")
</pallas_src>

<mosaic_0001>
module attributes {stable_mosaic.version = 11 : i64} {
  func.func @_mlp_kernel(%arg0: i32, %arg1: i32, %arg2: memref<8x256xf32, #tpu.memory_space<vmem>>, %arg3: memref<256x256xf32, #tpu.memory_space<vmem>>, %arg4: memref<1x256xf32, #tpu.memory_space<vmem>>, %arg5: memref<256x256xf32, #tpu.memory_space<vmem>>, %arg6: memref<1x256xf32, #tpu.memory_space<vmem>>, %arg7: memref<8x256xf32, #tpu.memory_space<vmem>>, %arg8: memref<8x256xf32, #tpu.memory_space<vmem>>) attributes {dimension_semantics = [#tpu.dimension_semantics<parallel>, #tpu.dimension_semantics<arbitrary>], iteration_bounds = array<i64: 1, 1>, scalar_prefetch = 0 : i64, scratch_operands = 1 : i64, tpu.core_type = #tpu.core_type<tc>, window_params = [{transform_indices = @transform_0, window_bounds = array<i64: 8, 256>}, {pipeline_mode = #tpu.pipeline_mode<synchronous>, transform_indices = @transform_1, window_bounds = array<i64: 256, 256>}, {pipeline_mode = #tpu.pipeline_mode<synchronous>, transform_indices = @transform_2, window_bounds = array<i64: 1, 256>}, {pipeline_mode = #tpu.pipeline_mode<synchronous>, transform_indices = @transform_3, window_bounds = array<i64: 256, 256>}, {pipeline_mode = #tpu.pipeline_mode<synchronous>, transform_indices = @transform_4, window_bounds = array<i64: 1, 256>}, {transform_indices = @transform_5, window_bounds = array<i64: 8, 256>}]} {
    %c0_i32 = arith.constant 0 : i32
    %0 = arith.cmpi eq, %arg1, %c0_i32 : i32
    %1 = arith.extui %0 : i1 to i32
    %c0_i32_0 = arith.constant 0 : i32
    %2 = arith.cmpi ne, %1, %c0_i32_0 : i32
    scf.if %2 {
      %c0_8 = arith.constant 0 : index
      %c0_9 = arith.constant 0 : index
      %10 = vector.load %arg2[%c0_8, %c0_9] : memref<8x256xf32, #tpu.memory_space<vmem>>, vector<8x256xf32>
      %c0_10 = arith.constant 0 : index
      %c0_11 = arith.constant 0 : index
      %11 = vector.load %arg3[%c0_10, %c0_11] : memref<256x256xf32, #tpu.memory_space<vmem>>, vector<256x256xf32>
      %cst_12 = arith.constant dense<0.000000e+00> : vector<8x256xf32>
      %12 = tpu.matmul %10, %11, %cst_12 {dimension_numbers = #tpu.dot_dimension_numbers<[1], [0], [0], [1], [0, 0, 1, 1], [], []>} : vector<8x256xf32>, vector<256x256xf32>, vector<8x256xf32> -> vector<8x256xf32>
      %c0_13 = arith.constant 0 : index
      %c0_14 = arith.constant 0 : index
      %13 = vector.load %arg4[%c0_13, %c0_14] : memref<1x256xf32, #tpu.memory_space<vmem>>, vector<1x256xf32>
      %14 = vector.broadcast %13 : vector<1x256xf32> to vector<8x256xf32>
      %15 = arith.addf %12, %14 : vector<8x256xf32>
      %cst_15 = arith.constant 0.000000e+00 : f32
      %16 = vector.broadcast %cst_15 : f32 to vector<8x256xf32>
      %17 = arith.maximumf %15, %16 : vector<8x256xf32>
      %c0_16 = arith.constant 0 : index
      %c0_17 = arith.constant 0 : index
      %18 = vector.load %arg8[%c0_16, %c0_17] : memref<8x256xf32, #tpu.memory_space<vmem>>, vector<8x256xf32>
      tpu.vector_store %arg8[%c0_16, %c0_17], %17 {strides = array<i32>} : memref<8x256xf32, #tpu.memory_space<vmem>>, vector<8x256xf32>,
    } else {
    }
    %c0 = arith.constant 0 : index
    %c0_1 = arith.constant 0 : index
    %3 = vector.load %arg8[%c0, %c0_1] : memref<8x256xf32, #tpu.memory_space<vmem>>, vector<8x256xf32>
    %c0_2 = arith.constant 0 : index
    %c0_3 = arith.constant 0 : index
    %4 = vector.load %arg5[%c0_2, %c0_3] : memref<256x256xf32, #tpu.memory_space<vmem>>, vector<256x256xf32>
    %cst = arith.constant dense<0.000000e+00> : vector<8x256xf32>
    %5 = tpu.matmul %3, %4, %cst {dimension_numbers = #tpu.dot_dimension_numbers<[1], [0], [0], [1], [0, 0, 1, 1], [], []>} : vector<8x256xf32>, vector<256x256xf32>, vector<8x256xf32> -> vector<8x256xf32>
    %c0_4 = arith.constant 0 : index
    %c0_5 = arith.constant 0 : index
    %6 = vector.load %arg6[%c0_4, %c0_5] : memref<1x256xf32, #tpu.memory_space<vmem>>, vector<1x256xf32>
    %7 = vector.broadcast %6 : vector<1x256xf32> to vector<8x256xf32>
    %8 = arith.addf %5, %7 : vector<8x256xf32>
    %c0_6 = arith.constant 0 : index
    %c0_7 = arith.constant 0 : index
    %9 = vector.load %arg7[%c0_6, %c0_7] : memref<8x256xf32, #tpu.memory_space<vmem>>, vector<8x256xf32>
    tpu.vector_store %arg7[%c0_6, %c0_7], %8 {strides = array<i32>} : memref<8x256xf32, #tpu.memory_space<vmem>>, vector<8x256xf32>,
    return
  }
  func.func @transform_0(%arg0: i32, %arg1: i32) -> (i32, i32) {
    %c0_i32 = arith.constant 0 : i32
    %c0_i32_0 = arith.constant 0 : i32
    return %arg0, %c0_i32 : i32, i32
  }
  func.func @transform_1(%arg0: i32, %arg1: i32) -> (i32, i32) {
    %c0_i32 = arith.constant 0 : i32
    %c0_i32_0 = arith.constant 0 : i32
    %c0_i32_1 = arith.constant 0 : i32
    return %c0_i32, %c0_i32_0 : i32, i32
  }
  func.func @transform_2(%arg0: i32, %arg1: i32) -> (i32, i32) {
    %c0_i32 = arith.constant 0 : i32
    %c0_i32_0 = arith.constant 0 : i32
    %c0_i32_1 = arith.constant 0 : i32
    return %c0_i32, %c0_i32_0 : i32, i32
  }
  func.func @transform_3(%arg0: i32, %arg1: i32) -> (i32, i32) {
    %c0_i32 = arith.constant 0 : i32
    %c0_i32_0 = arith.constant 0 : i32
    return %c0_i32, %arg1 : i32, i32
  }
  func.func @transform_4(%arg0: i32, %arg1: i32) -> (i32, i32) {
    %c0_i32 = arith.constant 0 : i32
    %c0_i32_0 = arith.constant 0 : i32
    return %c0_i32, %arg1 : i32, i32
  }
  func.func @transform_5(%arg0: i32, %arg1: i32) -> (i32, i32) {
    %c0_i32 = arith.constant 0 : i32
    return %arg0, %arg1 : i32, i32
  }
}

module attributes {stable_mosaic.version = 11 : i64} {
  func.func @_mlp_kernel(%arg0: i32, %arg1: i32, %arg2: memref<8x256xf32, #tpu.memory_space<vmem>>, %arg3: memref<256x256xf32, #tpu.memory_space<vmem>>, %arg4: memref<1x256xf32, #tpu.memory_space<vmem>>, %arg5: memref<256x256xf32, #tpu.memory_space<vmem>>, %arg6: memref<1x256xf32, #tpu.memory_space<vmem>>, %arg7: memref<8x256xf32, #tpu.memory_space<vmem>>, %arg8: memref<8x256xf32, #tpu.memory_space<vmem>>) attributes {dimension_semantics = [#tpu.dimension_semantics<parallel>, #tpu.dimension_semantics<arbitrary>], iteration_bounds = array<i64: 1, 1>, scalar_prefetch = 0 : i64, scratch_operands = 1 : i64, tpu.core_type = #tpu.core_type<tc>, window_params = [{transform_indices = @transform_0, window_bounds = array<i64: 8, 256>}, {pipeline_mode = #tpu.pipeline_mode<synchronous>, transform_indices = @transform_1, window_bounds = array<i64: 256, 256>}, {pipeline_mode = #tpu.pipeline_mode<synchronous>, transform_indices = @transform_2, window_bounds = array<i64: 1, 256>}, {transform_indices = @transform_3, window_bounds = array<i64: 256, 256>}, {transform_indices = @transform_4, window_bounds = array<i64: 1, 256>}, {transform_indices = @transform_5, window_bounds = array<i64: 8, 256>}]} {
    %c0_i32 = arith.constant 0 : i32
    %0 = arith.cmpi eq, %arg1, %c0_i32 : i32
    %1 = arith.extui %0 : i1 to i32
    %c0_i32_0 = arith.constant 0 : i32
    %2 = arith.cmpi ne, %1, %c0_i32_0 : i32
    scf.if %2 {
      %c0_8 = arith.constant 0 : index
      %c0_9 = arith.constant 0 : index
      %10 = vector.load %arg2[%c0_8, %c0_9] : memref<8x256xf32, #tpu.memory_space<vmem>>, vector<8x256xf32>
      %c0_10 = arith.constant 0 : index
      %c0_11 = arith.constant 0 : index
      %11 = vector.load %arg3[%c0_10, %c0_11] : memref<256x256xf32, #tpu.memory_space<vmem>>, vector<256x256xf32>
      %cst_12 = arith.constant dense<0.000000e+00> : vector<8x256xf32>
      %12 = tpu.matmul %10, %11, %cst_12 {dimension_numbers = #tpu.dot_dimension_numbers<[1], [0], [0], [1], [0, 0, 1, 1], [], []>} : vector<8x256xf32>, vector<256x256xf32>, vector<8x256xf32> -> vector<8x256xf32>
      %c0_13 = arith.constant 0 : index
      %c0_14 = arith.constant 0 : index
      %13 = vector.load %arg4[%c0_13, %c0_14] : memref<1x256xf32, #tpu.memory_space<vmem>>, vector<1x256xf32>
      %14 = vector.broadcast %13 : vector<1x256xf32> to vector<8x256xf32>
      %15 = arith.addf %12, %14 : vector<8x256xf32>
      %cst_15 = arith.constant 0.000000e+00 : f32
      %16 = vector.broadcast %cst_15 : f32 to vector<8x256xf32>
      %17 = arith.maximumf %15, %16 : vector<8x256xf32>
      %c0_16 = arith.constant 0 : index
      %c0_17 = arith.constant 0 : index
      %18 = vector.load %arg8[%c0_16, %c0_17] : memref<8x256xf32, #tpu.memory_space<vmem>>, vector<8x256xf32>
      tpu.vector_store %arg8[%c0_16, %c0_17], %17 {strides = array<i32>} : memref<8x256xf32, #tpu.memory_space<vmem>>, vector<8x256xf32>,
    } else {
    }
    %c0 = arith.constant 0 : index
    %c0_1 = arith.constant 0 : index
    %3 = vector.load %arg8[%c0, %c0_1] : memref<8x256xf32, #tpu.memory_space<vmem>>, vector<8x256xf32>
    %c0_2 = arith.constant 0 : index
    %c0_3 = arith.constant 0 : index
    %4 = vector.load %arg5[%c0_2, %c0_3] : memref<256x256xf32, #tpu.memory_space<vmem>>, vector<256x256xf32>
    %cst = arith.constant dense<0.000000e+00> : vector<8x256xf32>
    %5 = tpu.matmul %3, %4, %cst {dimension_numbers = #tpu.dot_dimension_numbers<[1], [0], [0], [1], [0, 0, 1, 1], [], []>} : vector<8x256xf32>, vector<256x256xf32>, vector<8x256xf32> -> vector<8x256xf32>
    %c0_4 = arith.constant 0 : index
    %c0_5 = arith.constant 0 : index
    %6 = vector.load %arg6[%c0_4, %c0_5] : memref<1x256xf32, #tpu.memory_space<vmem>>, vector<1x256xf32>
    %7 = vector.broadcast %6 : vector<1x256xf32> to vector<8x256xf32>
    %8 = arith.addf %5, %7 : vector<8x256xf32>
    %c0_6 = arith.constant 0 : index
    %c0_7 = arith.constant 0 : index
    %9 = vector.load %arg7[%c0_6, %c0_7] : memref<8x256xf32, #tpu.memory_space<vmem>>, vector<8x256xf32>
    tpu.vector_store %arg7[%c0_6, %c0_7], %8 {strides = array<i32>} : memref<8x256xf32, #tpu.memory_space<vmem>>, vector<8x256xf32>,
    return
  }
  func.func @transform_0(%arg0: i32, %arg1: i32) -> (i32, i32) {
    %c0_i32 = arith.constant 0 : i32
    %c0_i32_0 = arith.constant 0 : i32
    return %arg0, %c0_i32 : i32, i32
  }
  func.func @transform_1(%arg0: i32, %arg1: i32) -> (i32, i32) {
    %c0_i32 = arith.constant 0 : i32
    %c0_i32_0 = arith.constant 0 : i32
    %c0_i32_1 = arith.constant 0 : i32
    return %c0_i32, %c0_i32_0 : i32, i32
  }
  func.func @transform_2(%arg0: i32, %arg1: i32) -> (i32, i32) {
    %c0_i32 = arith.constant 0 : i32
    %c0_i32_0 = arith.constant 0 : i32
    %c0_i32_1 = arith.constant 0 : i32
    return %c0_i32, %c0_i32_0 : i32, i32
  }
  func.func @transform_3(%arg0: i32, %arg1: i32) -> (i32, i32) {
    %c0_i32 = arith.constant 0 : i32
    %c0_i32_0 = arith.constant 0 : i32
    return %c0_i32, %arg1 : i32, i32
  }
  func.func @transform_4(%arg0: i32, %arg1: i32) -> (i32, i32) {
    %c0_i32 = arith.constant 0 : i32
    %c0_i32_0 = arith.constant 0 : i32
    return %c0_i32, %arg1 : i32, i32
  }
  func.func @transform_5(%arg0: i32, %arg1: i32) -> (i32, i32) {
    %c0_i32 = arith.constant 0 : i32
    return %arg0, %arg1 : i32, i32
  }
}

</mosaic_0001>

<llo_original>
// kernel: tpu_custom_call.1
$region0: #{tpu_custom_call.1}
  #allocation0 [shape = 'u32[]', space=smem, size = 0x4, offset = 0x4, fixed_abs, tag = 'smem constant byte address 0x4 - core index']
  #allocation1 [shape = 'u32[144,128]{1,0:T(1,128)}', space=vmem, size = 0x12000, scoped, tag = 'internal scratch']
  #allocation2 [shape = 'f32[8,256]{1,0:T(8,128)}', space=vmem, size = 0x2000, scoped, tag = 'scratch operand']
  %s0 = inlined_call_operand.hbm [shape: f32[8,256], index: 0, kind: input, shape index: {}]
  %s1 = inlined_call_operand.hbm [shape: f32[256,256], index: 1, kind: input, shape index: {}]
  %s2 = inlined_call_operand.vmem [shape: f32[1,256], index: 2, kind: input, shape index: {}]
  %s3 = inlined_call_operand.hbm [shape: f32[256,256], index: 3, kind: input, shape index: {}]
  %s4 = inlined_call_operand.vmem [shape: f32[1,256], index: 4, kind: input, shape index: {}]
  %s5 = inlined_call_operand.hbm [shape: f32[8,256], index: 5, kind: output, shape index: {}]
  %s6 = sld [smem:[#allocation0]]
  $region46: #{tpu_custom_call.1} parent=0
    _
  %s8 = ssub.s32 1, %s6
  %s9 = scalar_select 0, %s8, %s6
  $region1: #{tpu_custom_call.1} parent=0
    #allocation3 [shape = 'u8[8192]{0}', space=vmem, size = 0x2000, scoped, tag = 'input window, operand 0, single buffered']
    #allocation4 [shape = 's32[1]{0}', space=sflag, size = 0x4, scoped, tag = 'scoped memory for tpu_custom_call.1']
    #allocation5 [shape = 's32[1]{0}', space=sflag, size = 0x4, scoped, tag = 'scoped memory for tpu_custom_call.1']
    #allocation6 [shape = 'u8[262144]{0}', space=vmem, size = 0x40000, scoped, tag = 'input window, operand 1, single buffered']
    #allocation7 [shape = 's32[1]{0}', space=sflag, size = 0x4, scoped, tag = 'scoped memory for tpu_custom_call.1']
    #allocation8 [shape = 'u8[262144]{0}', space=vmem, size = 0x40000, scoped, tag = 'input window, operand 3, single buffered']
    #allocation9 [shape = 'u8[8192]{0}', space=vmem, size = 0x2000, scoped, tag = 'output window, operand 0, single buffered']
    %10 = vsyncpa [#allocation4], 0
    %11 = vsyncpa [#allocation7], 0
    %12 = vsyncpa [#allocation5], 0
    // Predicated region
    $region2: #{tpu_custom_call.1} parent=1 // pred_check
      _
    $region3: #{tpu_custom_call.1} parent=1 // pred_check_branch
      %14 = sbr.rel (0) target = $region5
    $region4: #{tpu_custom_call.1} parent=1 // pred_region
      %s16 = ssub.s32 256, 256
      %17 = vsyncadd [#allocation4], %s16
      %s19 = sshll.u32 [#allocation3], 4
      %s20 = int_to_ptr.vmem [resolvable:$true] %s19
      %22 = dma.hbm_to_vmem [thread:$0]  %s0, 256, %s20, [#allocation4]
    $region5: #{tpu_custom_call.1} parent=1 // pred_fallthru
      _
    // Predicated region
    $region6: #{tpu_custom_call.1} parent=1 // pred_check
      _
    $region7: #{tpu_custom_call.1} parent=1 // pred_check_branch
      %24 = sbr.rel (0) target = $region9
    $region8: #{tpu_custom_call.1} parent=1 // pred_region
      %s26 = ssub.s32 8192, 8192
      %27 = vsyncadd [#allocation7], %s26
      %s28 = sshll.u32 [#allocation6], 4
      %s29 = int_to_ptr.vmem [resolvable:$true] %s28
      %34 = dma.hbm_to_vmem [thread:$0]  %s1, 8192, %s29, [#allocation7], 256, 256, 16
    $region9: #{tpu_custom_call.1} parent=1 // pred_fallthru
      _
    // Predicated region
    $region10: #{tpu_custom_call.1} parent=1 // pred_check
      _
    $region11: #{tpu_custom_call.1} parent=1 // pred_check_branch
      %36 = sbr.rel (0) target = $region13
    $region12: #{tpu_custom_call.1} parent=1 // pred_region
      _
    $region13: #{tpu_custom_call.1} parent=1 // pred_fallthru
      _
    // Predicated region
    $region14: #{tpu_custom_call.1} parent=1 // pred_check
      _
    $region15: #{tpu_custom_call.1} parent=1 // pred_check_branch
      %38 = sbr.rel (0) target = $region17
    $region16: #{tpu_custom_call.1} parent=1 // pred_region
      %s40 = ssub.s32 8192, 8192
      %41 = vsyncadd [#allocation7], %s40
      %s42 = sshll.u32 [#allocation8], 4
      %s43 = int_to_ptr.vmem [resolvable:$true] %s42
      %48 = dma.hbm_to_vmem [thread:$0]  %s3, 8192, %s43, [#allocation7], 256, 256, 16
    $region17: #{tpu_custom_call.1} parent=1 // pred_fallthru
      _
    // Predicated region
    $region18: #{tpu_custom_call.1} parent=1 // pred_check
      _
    $region19: #{tpu_custom_call.1} parent=1 // pred_check_branch
      %50 = sbr.rel (0) target = $region21
    $region20: #{tpu_custom_call.1} parent=1 // pred_region
      _
    $region21: #{tpu_custom_call.1} parent=1 // pred_fallthru
      _
    // Predicated region
    $region22: #{tpu_custom_call.1} parent=1 // pred_check
      _
    $region23: #{tpu_custom_call.1} parent=1 // pred_check_branch
      %52 = sbr.rel (0) target = $region25
    $region24: #{tpu_custom_call.1} parent=1 // pred_region
      %53 = dma.done [#allocation4], 256
    $region25: #{tpu_custom_call.1} parent=1 // pred_fallthru
      _
    // Predicated region
    $region26: #{tpu_custom_call.1} parent=1 // pred_check
      _
    $region27: #{tpu_custom_call.1} parent=1 // pred_check_branch
      %55 = sbr.rel (0) target = $region29
    $region28: #{tpu_custom_call.1} parent=1 // pred_region
      %56 = dma.done [#allocation7], 8192
    $region29: #{tpu_custom_call.1} parent=1 // pred_fallthru
      _
    // Predicated region
    $region30: #{tpu_custom_call.1} parent=1 // pred_check
      _
    $region31: #{tpu_custom_call.1} parent=1 // pred_check_branch
      %58 = sbr.rel (0) target = $region33
    $region32: #{tpu_custom_call.1} parent=1 // pred_region
      %59 = dma.done [#allocation7], 8192
    $region33: #{tpu_custom_call.1} parent=1 // pred_fallthru
      _
    %p60 = scmp.eq.s32.totalorder 0, 0
    // Predicated region
    $region34: #{tpu_custom_call.1} parent=1 // pred_check
      %p61 = pneg %p60
    $region35: #{tpu_custom_call.1} parent=1 // pred_check_branch
      %63 = sbr.rel (%p61) target = $region37
    $region36: #{tpu_custom_call.1} parent=1 // pred_region
      %v64 = vld [vmem:[#allocation3] sm:$0xff]
      %v65 = vld [vmem:[#allocation3 + $0x8] sm:$0xff]
      %v66 = vld [vmem:[#allocation6] sm:$0xff]
      %v67 = vld [vmem:[#allocation6 + $0x8] sm:$0xff]
      %v68 = vld [vmem:[#allocation6 + $0x10] sm:$0xff]
      %v69 = vld [vmem:[#allocation6 + $0x18] sm:$0xff]
      %v70 = vld [vmem:[#allocation6 + $0x20] sm:$0xff]
      %v71 = vld [vmem:[#allocation6 + $0x28] sm:$0xff]
      %v72 = vld [vmem:[#allocation6 + $0x30] sm:$0xff]
      %v73 = vld [vmem:[#allocation6 + $0x38] sm:$0xff]
      %v74 = vld [vmem:[#allocation6 + $0x40] sm:$0xff]
      %v75 = vld [vmem:[#allocation6 + $0x48] sm:$0xff]
      %v76 = vld [vmem:[#allocation6 + $0x50] sm:$0xff]
      %v77 = vld [vmem:[#allocation6 + $0x58] sm:$0xff]
      %v78 = vld [vmem:[#allocation6 + $0x60] sm:$0xff]
      %v79 = vld [vmem:[#allocation6 + $0x68] sm:$0xff]
      %v80 = vld [vmem:[#allocation6 + $0x70] sm:$0xff]
      %v81 = vld [vmem:[#allocation6 + $0x78] sm:$0xff]
      %v82 = vld [vmem:[#allocation6 + $0x80] sm:$0xff]
      %v83 = vld [vmem:[#allocation6 + $0x88] sm:$0xff]
      %v84 = vld [vmem:[#allocation6 + $0x90] sm:$0xff]
      %v85 = vld [vmem:[#allocation6 + $0x98] sm:$0xff]
      %v86 = vld [vmem:[#allocation6 + $0xa0] sm:$0xff]
      %v87 = vld [vmem:[#allocation6 + $0xa8] sm:$0xff]
      %v88 = vld [vmem:[#allocation6 + $0xb0] sm:$0xff]
      %v89 = vld [vmem:[#allocation6 + $0xb8] sm:$0xff]
      %v90 = vld [vmem:[#allocation6 + $0xc0] sm:$0xff]
      %v91 = vld [vmem:[#allocation6 + $0xc8] sm:$0xff]
      %v92 = vld [vmem:[#allocation6 + $0xd0] sm:$0xff]
      %v93 = vld [vmem:[#allocation6 + $0xd8] sm:$0xff]
      %v94 = vld [vmem:[#allocation6 + $0xe0] sm:$0xff]
      %v95 = vld [vmem:[#allocation6 + $0xe8] sm:$0xff]
      %v96 = vld [vmem:[#allocation6 + $0xf0] sm:$0xff]
      %v97 = vld [vmem:[#allocation6 + $0xf8] sm:$0xff]
      %v98 = vld [vmem:[#allocation6 + $0x100] sm:$0xff]
      %v99 = vld [vmem:[#allocation6 + $0x108] sm:$0xff]
      %v100 = vld [vmem:[#allocation6 + $0x110] sm:$0xff]
      %v101 = vld [vmem:[#allocation6 + $0x118] sm:$0xff]
      %v102 = vld [vmem:[#allocation6 + $0x120] sm:$0xff]
      %v103 = vld [vmem:[#allocation6 + $0x128] sm:$0xff]
      %v104 = vld [vmem:[#allocation6 + $0x130] sm:$0xff]
      %v105 = vld [vmem:[#allocation6 + $0x138] sm:$0xff]
      %v106 = vld [vmem:[#allocation6 + $0x140] sm:$0xff]
      %v107 = vld [vmem:[#allocation6 + $0x148] sm:$0xff]
      %v108 = vld [vmem:[#allocation6 + $0x150] sm:$0xff]
      %v109 = vld [vmem:[#allocation6 + $0x158] sm:$0xff]
      %v110 = vld [vmem:[#allocation6 + $0x160] sm:$0xff]
      %v111 = vld [vmem:[#allocation6 + $0x168] sm:$0xff]
      %v112 = vld [vmem:[#allocation6 + $0x170] sm:$0xff]
      %v113 = vld [vmem:[#allocation6 + $0x178] sm:$0xff]
      %v114 = vld [vmem:[#allocation6 + $0x180] sm:$0xff]
      %v115 = vld [vmem:[#allocation6 + $0x188] sm:$0xff]
      %v116 = vld [vmem:[#allocation6 + $0x190] sm:$0xff]
      %v117 = vld [vmem:[#allocation6 + $0x198] sm:$0xff]
      %v118 = vld [vmem:[#allocation6 + $0x1a0] sm:$0xff]
      %v119 = vld [vmem:[#allocation6 + $0x1a8] sm:$0xff]
      %v120 = vld [vmem:[#allocation6 + $0x1b0] sm:$0xff]
      %v121 = vld [vmem:[#allocation6 + $0x1b8] sm:$0xff]
      %v122 = vld [vmem:[#allocation6 + $0x1c0] sm:$0xff]
      %v123 = vld [vmem:[#allocation6 + $0x1c8] sm:$0xff]
      %v124 = vld [vmem:[#allocation6 + $0x1d0] sm:$0xff]
      %v125 = vld [vmem:[#allocation6 + $0x1d8] sm:$0xff]
      %v126 = vld [vmem:[#allocation6 + $0x1e0] sm:$0xff]
      %v127 = vld [vmem:[#allocation6 + $0x1e8] sm:$0xff]
      %v128 = vld [vmem:[#allocation6 + $0x1f0] sm:$0xff]
      %v129 = vld [vmem:[#allocation6 + $0x1f8] sm:$0xff]
      %v130 = vld [vmem:[%s2] sm:$0x3]
      %v132 = vlaneseq
      %v133 = vshrl.u32 %v132, 7
      %v134 = vsub.s32 0, %v133
      %v135 = vrot.slane %v130, %v134
      %v136 = vlaneseq
      %v137 = vshrl.u32 %v136, 7
      %v138 = vsub.s32 1, %v137
      %v139 = vrot.slane %v130, %v138
      %142 = vmatprep.subr.mxu0 %v67
      %143 = vmatpush1.msra.mxu0 %v66
      %144 = vmatprep.subr.mxu0 %v69
      %145 = vmatpush1.msra.mxu0 %v68
      %146 = vmatprep.subr.mxu0 %v71
      %147 = vmatpush1.msra.mxu0 %v70
      %148 = vmatprep.subr.mxu0 %v73
      %149 = vmatpush1.msra.mxu0 %v72
      %150 = vmatprep.subr.mxu0 %v75
      %151 = vmatpush1.msra.mxu0 %v74
      %152 = vmatprep.subr.mxu0 %v77
      %153 = vmatpush1.msra.mxu0 %v76
      %154 = vmatprep.subr.mxu0 %v79
      %155 = vmatpush1.msra.mxu0 %v78
      %156 = vmatprep.subr.mxu0 %v81
      %157 = vmatpush1.msra.mxu0 %v80
      %158 = vmatprep.subr.mxu0 %v83
      %159 = vmatpush1.msra.mxu0 %v82
      %160 = vmatprep.subr.mxu0 %v85
      %161 = vmatpush1.msra.mxu0 %v84
      %162 = vmatprep.subr.mxu0 %v87
      %163 = vmatpush1.msra.mxu0 %v86
      %164 = vmatprep.subr.mxu0 %v89
      %165 = vmatpush1.msra.mxu0 %v88
      %166 = vmatprep.subr.mxu0 %v91
      %167 = vmatpush1.msra.mxu0 %v90
      %168 = vmatprep.subr.mxu0 %v93
      %169 = vmatpush1.msra.mxu0 %v92
      %170 = vmatprep.subr.mxu0 %v95
      %171 = vmatpush1.msra.mxu0 %v94
      %172 = vmatprep.subr.mxu0 %v97
      %173 = vmatpush1.msra.mxu0 %v96
      %174 = vmatprep.subr.mxu0 %v99
      %175 = vmatpush1.msra.mxu0 %v98
      %176 = vmatprep.subr.mxu0 %v101
      %177 = vmatpush1.msra.mxu0 %v100
      %178 = vmatprep.subr.mxu0 %v103
      %179 = vmatpush1.msra.mxu0 %v102
      %180 = vmatprep.subr.mxu0 %v105
      %181 = vmatpush1.msra.mxu0 %v104
      %182 = vmatprep.subr.mxu0 %v107
      %183 = vmatpush1.msra.mxu0 %v106
      %184 = vmatprep.subr.mxu0 %v109
      %185 = vmatpush1.msra.mxu0 %v108
      %186 = vmatprep.subr.mxu0 %v111
      %187 = vmatpush1.msra.mxu0 %v110
      %188 = vmatprep.subr.mxu0 %v113
      %189 = vmatpush1.msra.mxu0 %v112
      %190 = vmatprep.subr.mxu0 %v115
      %191 = vmatpush1.msra.mxu0 %v114
      %192 = vmatprep.subr.mxu0 %v117
      %193 = vmatpush1.msra.mxu0 %v116
      %194 = vmatprep.subr.mxu0 %v119
      %195 = vmatpush1.msra.mxu0 %v118
      %196 = vmatprep.subr.mxu0 %v121
      %197 = vmatpush1.msra.mxu0 %v120
      %198 = vmatprep.subr.mxu0 %v123
      %199 = vmatpush1.msra.mxu0 %v122
      %200 = vmatprep.subr.mxu0 %v125
      %201 = vmatpush1.msra.mxu0 %v124
      %202 = vmatprep.subr.mxu0 %v127
      %203 = vmatpush1.msra.mxu0 %v126
      %204 = vmatprep.subr.mxu0 %v129
      %205 = vmatpush1.msra.mxu0 %v128
      %206 = vmatprep.mubr.f32.mxu0 %v65
      %207 = vmatmul.mubr.f32.gmra.mrb[0].mxu0 %v64
      %v208 = vpop.f32.mrb[0].mxu0
      %v209 = vadd.f32 %v135, %v208
      %v210 = vpop.f32.mrb[0].mxu0
      %v211 = vadd.f32 %v139, %v210
      %212 = vdwg.mxu0
      %v213 = vmax.f32 %v209, 0.0
      %v214 = vmax.f32 %v211, 0.0
      %215 = vst [vmem:[#allocation2] sm:$0xff] %v213
      %216 = vst [vmem:[#allocation2 + $0x8] sm:$0xff] %v214
    $region37: #{tpu_custom_call.1} parent=1 // pred_fallthru
      _
    %v217 = vld [vmem:[#allocation2] sm:$0xff]
    %v218 = vld [vmem:[#allocation2 + $0x8] sm:$0xff]
    %v219 = vld [vmem:[#allocation8] sm:$0xff]
    %v220 = vld [vmem:[#allocation8 + $0x8] sm:$0xff]
    %v221 = vld [vmem:[#allocation8 + $0x10] sm:$0xff]
    %v222 = vld [vmem:[#allocation8 + $0x18] sm:$0xff]
    %v223 = vld [vmem:[#allocation8 + $0x20] sm:$0xff]
    %v224 = vld [vmem:[#allocation8 + $0x28] sm:$0xff]
    %v225 = vld [vmem:[#allocation8 + $0x30] sm:$0xff]
    %v226 = vld [vmem:[#allocation8 + $0x38] sm:$0xff]
    %v227 = vld [vmem:[#allocation8 + $0x40] sm:$0xff]
    %v228 = vld [vmem:[#allocation8 + $0x48] sm:$0xff]
    %v229 = vld [vmem:[#allocation8 + $0x50] sm:$0xff]
    %v230 = vld [vmem:[#allocation8 + $0x58] sm:$0xff]
    %v231 = vld [vmem:[#allocation8 + $0x60] sm:$0xff]
    %v232 = vld [vmem:[#allocation8 + $0x68] sm:$0xff]
    %v233 = vld [vmem:[#allocation8 + $0x70] sm:$0xff]
    %v234 = vld [vmem:[#allocation8 + $0x78] sm:$0xff]
    %v235 = vld [vmem:[#allocation8 + $0x80] sm:$0xff]
    %v236 = vld [vmem:[#allocation8 + $0x88] sm:$0xff]
    %v237 = vld [vmem:[#allocation8 + $0x90] sm:$0xff]
    %v238 = vld [vmem:[#allocation8 + $0x98] sm:$0xff]
    %v239 = vld [vmem:[#allocation8 + $0xa0] sm:$0xff]
    %v240 = vld [vmem:[#allocation8 + $0xa8] sm:$0xff]
    %v241 = vld [vmem:[#allocation8 + $0xb0] sm:$0xff]
    %v242 = vld [vmem:[#allocation8 + $0xb8] sm:$0xff]
    %v243 = vld [vmem:[#allocation8 + $0xc0] sm:$0xff]
    %v244 = vld [vmem:[#allocation8 + $0xc8] sm:$0xff]
    %v245 = vld [vmem:[#allocation8 + $0xd0] sm:$0xff]
    %v246 = vld [vmem:[#allocation8 + $0xd8] sm:$0xff]
    %v247 = vld [vmem:[#allocation8 + $0xe0] sm:$0xff]
    %v248 = vld [vmem:[#allocation8 + $0xe8] sm:$0xff]
    %v249 = vld [vmem:[#allocation8 + $0xf0] sm:$0xff]
    %v250 = vld [vmem:[#allocation8 + $0xf8] sm:$0xff]
    %v251 = vld [vmem:[#allocation8 + $0x100] sm:$0xff]
    %v252 = vld [vmem:[#allocation8 + $0x108] sm:$0xff]
    %v253 = vld [vmem:[#allocation8 + $0x110] sm:$0xff]
    %v254 = vld [vmem:[#allocation8 + $0x118] sm:$0xff]
    %v255 = vld [vmem:[#allocation8 + $0x120] sm:$0xff]
    %v256 = vld [vmem:[#allocation8 + $0x128] sm:$0xff]
    %v257 = vld [vmem:[#allocation8 + $0x130] sm:$0xff]
    %v258 = vld [vmem:[#allocation8 + $0x138] sm:$0xff]
    %v259 = vld [vmem:[#allocation8 + $0x140] sm:$0xff]
    %v260 = vld [vmem:[#allocation8 + $0x148] sm:$0xff]
    %v261 = vld [vmem:[#allocation8 + $0x150] sm:$0xff]
    %v262 = vld [vmem:[#allocation8 + $0x158] sm:$0xff]
    %v263 = vld [vmem:[#allocation8 + $0x160] sm:$0xff]
    %v264 = vld [vmem:[#allocation8 + $0x168] sm:$0xff]
    %v265 = vld [vmem:[#allocation8 + $0x170] sm:$0xff]
    %v266 = vld [vmem:[#allocation8 + $0x178] sm:$0xff]
    %v267 = vld [vmem:[#allocation8 + $0x180] sm:$0xff]
    %v268 = vld [vmem:[#allocation8 + $0x188] sm:$0xff]
    %v269 = vld [vmem:[#allocation8 + $0x190] sm:$0xff]
    %v270 = vld [vmem:[#allocation8 + $0x198] sm:$0xff]
    %v271 = vld [vmem:[#allocation8 + $0x1a0] sm:$0xff]
    %v272 = vld [vmem:[#allocation8 + $0x1a8] sm:$0xff]
    %v273 = vld [vmem:[#allocation8 + $0x1b0] sm:$0xff]
    %v274 = vld [vmem:[#allocation8 + $0x1b8] sm:$0xff]
    %v275 = vld [vmem:[#allocation8 + $0x1c0] sm:$0xff]
    %v276 = vld [vmem:[#allocation8 + $0x1c8] sm:$0xff]
    %v277 = vld [vmem:[#allocation8 + $0x1d0] sm:$0xff]
    %v278 = vld [vmem:[#allocation8 + $0x1d8] sm:$0xff]
    %v279 = vld [vmem:[#allocation8 + $0x1e0] sm:$0xff]
    %v280 = vld [vmem:[#allocation8 + $0x1e8] sm:$0xff]
    %v281 = vld [vmem:[#allocation8 + $0x1f0] sm:$0xff]
    %v282 = vld [vmem:[#allocation8 + $0x1f8] sm:$0xff]
    %v283 = vld [vmem:[%s4] sm:$0x3]
    %v285 = vlaneseq
    %v286 = vshrl.u32 %v285, 7
    %v287 = vsub.s32 0, %v286
    %v288 = vrot.slane %v283, %v287
    %v289 = vlaneseq
    %v290 = vshrl.u32 %v289, 7
    %v291 = vsub.s32 1, %v290
    %v292 = vrot.slane %v283, %v291
    %295 = vmatprep.subr.mxu0 %v220
    %296 = vmatpush1.msra.mxu0 %v219
    %297 = vmatprep.subr.mxu0 %v222
    %298 = vmatpush1.msra.mxu0 %v221
    %299 = vmatprep.subr.mxu0 %v224
    %300 = vmatpush1.msra.mxu0 %v223
    %301 = vmatprep.subr.mxu0 %v226
    %302 = vmatpush1.msra.mxu0 %v225
    %303 = vmatprep.subr.mxu0 %v228
    %304 = vmatpush1.msra.mxu0 %v227
    %305 = vmatprep.subr.mxu0 %v230
    %306 = vmatpush1.msra.mxu0 %v229
    %307 = vmatprep.subr.mxu0 %v232
    %308 = vmatpush1.msra.mxu0 %v231
    %309 = vmatprep.subr.mxu0 %v234
    %310 = vmatpush1.msra.mxu0 %v233
    %311 = vmatprep.subr.mxu0 %v236
    %312 = vmatpush1.msra.mxu0 %v235
    %313 = vmatprep.subr.mxu0 %v238
    %314 = vmatpush1.msra.mxu0 %v237
    %315 = vmatprep.subr.mxu0 %v240
    %316 = vmatpush1.msra.mxu0 %v239
    %317 = vmatprep.subr.mxu0 %v242
    %318 = vmatpush1.msra.mxu0 %v241
    %319 = vmatprep.subr.mxu0 %v244
    %320 = vmatpush1.msra.mxu0 %v243
    %321 = vmatprep.subr.mxu0 %v246
    %322 = vmatpush1.msra.mxu0 %v245
    %323 = vmatprep.subr.mxu0 %v248
    %324 = vmatpush1.msra.mxu0 %v247
    %325 = vmatprep.subr.mxu0 %v250
    %326 = vmatpush1.msra.mxu0 %v249
    %327 = vmatprep.subr.mxu0 %v252
    %328 = vmatpush1.msra.mxu0 %v251
    %329 = vmatprep.subr.mxu0 %v254
    %330 = vmatpush1.msra.mxu0 %v253
    %331 = vmatprep.subr.mxu0 %v256
    %332 = vmatpush1.msra.mxu0 %v255
    %333 = vmatprep.subr.mxu0 %v258
    %334 = vmatpush1.msra.mxu0 %v257
    %335 = vmatprep.subr.mxu0 %v260
    %336 = vmatpush1.msra.mxu0 %v259
    %337 = vmatprep.subr.mxu0 %v262
    %338 = vmatpush1.msra.mxu0 %v261
    %339 = vmatprep.subr.mxu0 %v264
    %340 = vmatpush1.msra.mxu0 %v263
    %341 = vmatprep.subr.mxu0 %v266
    %342 = vmatpush1.msra.mxu0 %v265
    %343 = vmatprep.subr.mxu0 %v268
    %344 = vmatpush1.msra.mxu0 %v267
    %345 = vmatprep.subr.mxu0 %v270
    %346 = vmatpush1.msra.mxu0 %v269
    %347 = vmatprep.subr.mxu0 %v272
    %348 = vmatpush1.msra.mxu0 %v271
    %349 = vmatprep.subr.mxu0 %v274
    %350 = vmatpush1.msra.mxu0 %v273
    %351 = vmatprep.subr.mxu0 %v276
    %352 = vmatpush1.msra.mxu0 %v275
    %353 = vmatprep.subr.mxu0 %v278
    %354 = vmatpush1.msra.mxu0 %v277
    %355 = vmatprep.subr.mxu0 %v280
    %356 = vmatpush1.msra.mxu0 %v279
    %357 = vmatprep.subr.mxu0 %v282
    %358 = vmatpush1.msra.mxu0 %v281
    %359 = vmatprep.mubr.f32.mxu0 %v218
    %360 = vmatmul.mubr.f32.gmra.mrb[0].mxu0 %v217
    %v361 = vpop.f32.mrb[0].mxu0
    %v362 = vadd.f32 %v288, %v361
    %v363 = vpop.f32.mrb[0].mxu0
    %v364 = vadd.f32 %v292, %v363
    %365 = vdwg.mxu0
    %366 = vst [vmem:[#allocation9] sm:$0xff] %v362
    %367 = vst [vmem:[#allocation9 + $0x8] sm:$0xff] %v364
    // Predicated region
    $region38: #{tpu_custom_call.1} parent=1 // pred_check
      _
    $region39: #{tpu_custom_call.1} parent=1 // pred_check_branch
      %369 = sbr.rel (0) target = $region41
    $region40: #{tpu_custom_call.1} parent=1 // pred_region
      %s371 = ssub.s32 256, 256
      %372 = vsyncadd [#allocation5], %s371
      %s374 = sshll.u32 [#allocation9], 4
      %s375 = int_to_ptr.vmem [resolvable:$true] %s374
      %377 = dma.vmem_to_hbm [thread:$0]  %s375, 256, %s5, [#allocation5]
    $region41: #{tpu_custom_call.1} parent=1 // pred_fallthru
      _
    // Predicated region
    $region42: #{tpu_custom_call.1} parent=1 // pred_check
      _
    $region43: #{tpu_custom_call.1} parent=1 // pred_check_branch
      %379 = sbr.rel (0) target = $region45
    $region44: #{tpu_custom_call.1} parent=1 // pred_region
      %380 = dma.done [#allocation5], 256
    $region45: #{tpu_custom_call.1} parent=1 // pred_fallthru
      _
    %381 = vsyncpa [#allocation4], 1
    %382 = vsyncpa [#allocation7], 1
    %383 = vsyncpa [#allocation5], 1

// kernel: tpu_custom_call.1
$region0: #{tpu_custom_call.1}
  #allocation0 [shape = 'u32[]', space=smem, size = 0x4, offset = 0x4, fixed_abs, tag = 'smem constant byte address 0x4 - core index']
  #allocation1 [shape = 'u32[144,128]{1,0:T(1,128)}', space=vmem, size = 0x12000, scoped, tag = 'internal scratch']
  #allocation2 [shape = 'f32[8,256]{1,0:T(8,128)}', space=vmem, size = 0x2000, scoped, tag = 'scratch operand']
  %s0 = inlined_call_operand.hbm [shape: f32[8,256], index: 0, kind: input, shape index: {}]
  %s1 = inlined_call_operand.hbm [shape: f32[256,256], index: 1, kind: input, shape index: {}]
  %s2 = inlined_call_operand.vmem [shape: f32[1,256], index: 2, kind: input, shape index: {}]
  %s3 = inlined_call_operand.hbm [shape: f32[256,256], index: 3, kind: input, shape index: {}]
  %s4 = inlined_call_operand.vmem [shape: f32[1,256], index: 4, kind: input, shape index: {}]
  %s5 = inlined_call_operand.hbm [shape: f32[8,256], index: 5, kind: output, shape index: {}]
  %s6 = sld [smem:[#allocation0]]
  $region46: #{tpu_custom_call.1} parent=0
    _
  %s8 = ssub.s32 1, %s6
  %s9 = scalar_select 0, %s8, %s6
  $region1: #{tpu_custom_call.1} parent=0
    #allocation3 [shape = 'u8[8192]{0}', space=vmem, size = 0x2000, scoped, tag = 'input window, operand 0, single buffered']
    #allocation4 [shape = 's32[1]{0}', space=sflag, size = 0x4, scoped, tag = 'scoped memory for tpu_custom_call.1']
    #allocation5 [shape = 's32[1]{0}', space=sflag, size = 0x4, scoped, tag = 'scoped memory for tpu_custom_call.1']
    #allocation6 [shape = 'u8[262144]{0}', space=vmem, size = 0x40000, scoped, tag = 'input window, operand 1, single buffered']
    #allocation7 [shape = 's32[1]{0}', space=sflag, size = 0x4, scoped, tag = 'scoped memory for tpu_custom_call.1']
    #allocation8 [shape = 'u8[262144]{0}', space=vmem, size = 0x40000, scoped, tag = 'input window, operand 3, single buffered']
    #allocation9 [shape = 'u8[8192]{0}', space=vmem, size = 0x2000, scoped, tag = 'output window, operand 0, single buffered']
    %10 = vsyncpa [#allocation4], 0
    %11 = vsyncpa [#allocation7], 0
    %12 = vsyncpa [#allocation5], 0
    // Predicated region
    $region2: #{tpu_custom_call.1} parent=1 // pred_check
      _
    $region3: #{tpu_custom_call.1} parent=1 // pred_check_branch
      %14 = sbr.rel (0) target = $region5
    $region4: #{tpu_custom_call.1} parent=1 // pred_region
      %s16 = ssub.s32 256, 256
      %17 = vsyncadd [#allocation4], %s16
      %s19 = sshll.u32 [#allocation3], 4
      %s20 = int_to_ptr.vmem [resolvable:$true] %s19
      %22 = dma.hbm_to_vmem [thread:$0]  %s0, 256, %s20, [#allocation4]
    $region5: #{tpu_custom_call.1} parent=1 // pred_fallthru
      _
    // Predicated region
    $region6: #{tpu_custom_call.1} parent=1 // pred_check
      _
    $region7: #{tpu_custom_call.1} parent=1 // pred_check_branch
      %24 = sbr.rel (0) target = $region9
    $region8: #{tpu_custom_call.1} parent=1 // pred_region
      %s26 = ssub.s32 8192, 8192
      %27 = vsyncadd [#allocation7], %s26
      %s28 = sshll.u32 [#allocation6], 4
      %s29 = int_to_ptr.vmem [resolvable:$true] %s28
      %34 = dma.hbm_to_vmem [thread:$0]  %s1, 8192, %s29, [#allocation7], 256, 256, 16
    $region9: #{tpu_custom_call.1} parent=1 // pred_fallthru
      _
    // Predicated region
    $region10: #{tpu_custom_call.1} parent=1 // pred_check
      _
    $region11: #{tpu_custom_call.1} parent=1 // pred_check_branch
      %36 = sbr.rel (0) target = $region13
    $region12: #{tpu_custom_call.1} parent=1 // pred_region
      _
    $region13: #{tpu_custom_call.1} parent=1 // pred_fallthru
      _
    // Predicated region
    $region14: #{tpu_custom_call.1} parent=1 // pred_check
      _
    $region15: #{tpu_custom_call.1} parent=1 // pred_check_branch
      %38 = sbr.rel (0) target = $region17
    $region16: #{tpu_custom_call.1} parent=1 // pred_region
      %s40 = ssub.s32 8192, 8192
      %41 = vsyncadd [#allocation7], %s40
      %s42 = sshll.u32 [#allocation8], 4
      %s43 = int_to_ptr.vmem [resolvable:$true] %s42
      %48 = dma.hbm_to_vmem [thread:$0]  %s3, 8192, %s43, [#allocation7], 256, 256, 16
    $region17: #{tpu_custom_call.1} parent=1 // pred_fallthru
      _
    // Predicated region
    $region18: #{tpu_custom_call.1} parent=1 // pred_check
      _
    $region19: #{tpu_custom_call.1} parent=1 // pred_check_branch
      %50 = sbr.rel (0) target = $region21
    $region20: #{tpu_custom_call.1} parent=1 // pred_region
      _
    $region21: #{tpu_custom_call.1} parent=1 // pred_fallthru
      _
    // Predicated region
    $region22: #{tpu_custom_call.1} parent=1 // pred_check
      _
    $region23: #{tpu_custom_call.1} parent=1 // pred_check_branch
      %52 = sbr.rel (0) target = $region25
    $region24: #{tpu_custom_call.1} parent=1 // pred_region
      %53 = dma.done [#allocation4], 256
    $region25: #{tpu_custom_call.1} parent=1 // pred_fallthru
      _
    // Predicated region
    $region26: #{tpu_custom_call.1} parent=1 // pred_check
      _
    $region27: #{tpu_custom_call.1} parent=1 // pred_check_branch
      %55 = sbr.rel (0) target = $region29
    $region28: #{tpu_custom_call.1} parent=1 // pred_region
      %56 = dma.done [#allocation7], 8192
    $region29: #{tpu_custom_call.1} parent=1 // pred_fallthru
      _
    // Predicated region
    $region30: #{tpu_custom_call.1} parent=1 // pred_check
      _
    $region31: #{tpu_custom_call.1} parent=1 // pred_check_branch
      %58 = sbr.rel (0) target = $region33
    $region32: #{tpu_custom_call.1} parent=1 // pred_region
      %59 = dma.done [#allocation7], 8192
    $region33: #{tpu_custom_call.1} parent=1 // pred_fallthru
      _
    %p60 = scmp.eq.s32.totalorder 0, 0
    // Predicated region
    $region34: #{tpu_custom_call.1} parent=1 // pred_check
      %p61 = pneg %p60
    $region35: #{tpu_custom_call.1} parent=1 // pred_check_branch
      %63 = sbr.rel (%p61) target = $region37
    $region36: #{tpu_custom_call.1} parent=1 // pred_region
      %v64 = vld [vmem:[#allocation3] sm:$0xff]
      %v65 = vld [vmem:[#allocation3 + $0x8] sm:$0xff]
      %v66 = vld [vmem:[#allocation6] sm:$0xff]
      %v67 = vld [vmem:[#allocation6 + $0x8] sm:$0xff]
      %v68 = vld [vmem:[#allocation6 + $0x10] sm:$0xff]
      %v69 = vld [vmem:[#allocation6 + $0x18] sm:$0xff]
      %v70 = vld [vmem:[#allocation6 + $0x20] sm:$0xff]
      %v71 = vld [vmem:[#allocation6 + $0x28] sm:$0xff]
      %v72 = vld [vmem:[#allocation6 + $0x30] sm:$0xff]
      %v73 = vld [vmem:[#allocation6 + $0x38] sm:$0xff]
      %v74 = vld [vmem:[#allocation6 + $0x40] sm:$0xff]
      %v75 = vld [vmem:[#allocation6 + $0x48] sm:$0xff]
      %v76 = vld [vmem:[#allocation6 + $0x50] sm:$0xff]
      %v77 = vld [vmem:[#allocation6 + $0x58] sm:$0xff]
      %v78 = vld [vmem:[#allocation6 + $0x60] sm:$0xff]
      %v79 = vld [vmem:[#allocation6 + $0x68] sm:$0xff]
      %v80 = vld [vmem:[#allocation6 + $0x70] sm:$0xff]
      %v81 = vld [vmem:[#allocation6 + $0x78] sm:$0xff]
      %v82 = vld [vmem:[#allocation6 + $0x80] sm:$0xff]
      %v83 = vld [vmem:[#allocation6 + $0x88] sm:$0xff]
      %v84 = vld [vmem:[#allocation6 + $0x90] sm:$0xff]
      %v85 = vld [vmem:[#allocation6 + $0x98] sm:$0xff]
      %v86 = vld [vmem:[#allocation6 + $0xa0] sm:$0xff]
      %v87 = vld [vmem:[#allocation6 + $0xa8] sm:$0xff]
      %v88 = vld [vmem:[#allocation6 + $0xb0] sm:$0xff]
      %v89 = vld [vmem:[#allocation6 + $0xb8] sm:$0xff]
      %v90 = vld [vmem:[#allocation6 + $0xc0] sm:$0xff]
      %v91 = vld [vmem:[#allocation6 + $0xc8] sm:$0xff]
      %v92 = vld [vmem:[#allocation6 + $0xd0] sm:$0xff]
      %v93 = vld [vmem:[#allocation6 + $0xd8] sm:$0xff]
      %v94 = vld [vmem:[#allocation6 + $0xe0] sm:$0xff]
      %v95 = vld [vmem:[#allocation6 + $0xe8] sm:$0xff]
      %v96 = vld [vmem:[#allocation6 + $0xf0] sm:$0xff]
      %v97 = vld [vmem:[#allocation6 + $0xf8] sm:$0xff]
      %v98 = vld [vmem:[#allocation6 + $0x100] sm:$0xff]
      %v99 = vld [vmem:[#allocation6 + $0x108] sm:$0xff]
      %v100 = vld [vmem:[#allocation6 + $0x110] sm:$0xff]
      %v101 = vld [vmem:[#allocation6 + $0x118] sm:$0xff]
      %v102 = vld [vmem:[#allocation6 + $0x120] sm:$0xff]
      %v103 = vld [vmem:[#allocation6 + $0x128] sm:$0xff]
      %v104 = vld [vmem:[#allocation6 + $0x130] sm:$0xff]
      %v105 = vld [vmem:[#allocation6 + $0x138] sm:$0xff]
      %v106 = vld [vmem:[#allocation6 + $0x140] sm:$0xff]
      %v107 = vld [vmem:[#allocation6 + $0x148] sm:$0xff]
      %v108 = vld [vmem:[#allocation6 + $0x150] sm:$0xff]
      %v109 = vld [vmem:[#allocation6 + $0x158] sm:$0xff]
      %v110 = vld [vmem:[#allocation6 + $0x160] sm:$0xff]
      %v111 = vld [vmem:[#allocation6 + $0x168] sm:$0xff]
      %v112 = vld [vmem:[#allocation6 + $0x170] sm:$0xff]
      %v113 = vld [vmem:[#allocation6 + $0x178] sm:$0xff]
      %v114 = vld [vmem:[#allocation6 + $0x180] sm:$0xff]
      %v115 = vld [vmem:[#allocation6 + $0x188] sm:$0xff]
      %v116 = vld [vmem:[#allocation6 + $0x190] sm:$0xff]
      %v117 = vld [vmem:[#allocation6 + $0x198] sm:$0xff]
      %v118 = vld [vmem:[#allocation6 + $0x1a0] sm:$0xff]
      %v119 = vld [vmem:[#allocation6 + $0x1a8] sm:$0xff]
      %v120 = vld [vmem:[#allocation6 + $0x1b0] sm:$0xff]
      %v121 = vld [vmem:[#allocation6 + $0x1b8] sm:$0xff]
      %v122 = vld [vmem:[#allocation6 + $0x1c0] sm:$0xff]
      %v123 = vld [vmem:[#allocation6 + $0x1c8] sm:$0xff]
      %v124 = vld [vmem:[#allocation6 + $0x1d0] sm:$0xff]
      %v125 = vld [vmem:[#allocation6 + $0x1d8] sm:$0xff]
      %v126 = vld [vmem:[#allocation6 + $0x1e0] sm:$0xff]
      %v127 = vld [vmem:[#allocation6 + $0x1e8] sm:$0xff]
      %v128 = vld [vmem:[#allocation6 + $0x1f0] sm:$0xff]
      %v129 = vld [vmem:[#allocation6 + $0x1f8] sm:$0xff]
      %v130 = vld [vmem:[%s2] sm:$0x3]
      %v132 = vlaneseq
      %v133 = vshrl.u32 %v132, 7
      %v134 = vsub.s32 0, %v133
      %v135 = vrot.slane %v130, %v134
      %v136 = vlaneseq
      %v137 = vshrl.u32 %v136, 7
      %v138 = vsub.s32 1, %v137
      %v139 = vrot.slane %v130, %v138
      %142 = vmatprep.subr.mxu0 %v67
      %143 = vmatpush1.msra.mxu0 %v66
      %144 = vmatprep.subr.mxu0 %v69
      %145 = vmatpush1.msra.mxu0 %v68
      %146 = vmatprep.subr.mxu0 %v71
      %147 = vmatpush1.msra.mxu0 %v70
      %148 = vmatprep.subr.mxu0 %v73
      %149 = vmatpush1.msra.mxu0 %v72
      %150 = vmatprep.subr.mxu0 %v75
      %151 = vmatpush1.msra.mxu0 %v74
      %152 = vmatprep.subr.mxu0 %v77
      %153 = vmatpush1.msra.mxu0 %v76
      %154 = vmatprep.subr.mxu0 %v79
      %155 = vmatpush1.msra.mxu0 %v78
      %156 = vmatprep.subr.mxu0 %v81
      %157 = vmatpush1.msra.mxu0 %v80
      %158 = vmatprep.subr.mxu0 %v83
      %159 = vmatpush1.msra.mxu0 %v82
      %160 = vmatprep.subr.mxu0 %v85
      %161 = vmatpush1.msra.mxu0 %v84
      %162 = vmatprep.subr.mxu0 %v87
      %163 = vmatpush1.msra.mxu0 %v86
      %164 = vmatprep.subr.mxu0 %v89
      %165 = vmatpush1.msra.mxu0 %v88
      %166 = vmatprep.subr.mxu0 %v91
      %167 = vmatpush1.msra.mxu0 %v90
      %168 = vmatprep.subr.mxu0 %v93
      %169 = vmatpush1.msra.mxu0 %v92
      %170 = vmatprep.subr.mxu0 %v95
      %171 = vmatpush1.msra.mxu0 %v94
      %172 = vmatprep.subr.mxu0 %v97
      %173 = vmatpush1.msra.mxu0 %v96
      %174 = vmatprep.subr.mxu0 %v99
      %175 = vmatpush1.msra.mxu0 %v98
      %176 = vmatprep.subr.mxu0 %v101
      %177 = vmatpush1.msra.mxu0 %v100
      %178 = vmatprep.subr.mxu0 %v103
      %179 = vmatpush1.msra.mxu0 %v102
      %180 = vmatprep.subr.mxu0 %v105
      %181 = vmatpush1.msra.mxu0 %v104
      %182 = vmatprep.subr.mxu0 %v107
      %183 = vmatpush1.msra.mxu0 %v106
      %184 = vmatprep.subr.mxu0 %v109
      %185 = vmatpush1.msra.mxu0 %v108
      %186 = vmatprep.subr.mxu0 %v111
      %187 = vmatpush1.msra.mxu0 %v110
      %188 = vmatprep.subr.mxu0 %v113
      %189 = vmatpush1.msra.mxu0 %v112
      %190 = vmatprep.subr.mxu0 %v115
      %191 = vmatpush1.msra.mxu0 %v114
      %192 = vmatprep.subr.mxu0 %v117
      %193 = vmatpush1.msra.mxu0 %v116
      %194 = vmatprep.subr.mxu0 %v119
      %195 = vmatpush1.msra.mxu0 %v118
      %196 = vmatprep.subr.mxu0 %v121
      %197 = vmatpush1.msra.mxu0 %v120
      %198 = vmatprep.subr.mxu0 %v123
      %199 = vmatpush1.msra.mxu0 %v122
      %200 = vmatprep.subr.mxu0 %v125
      %201 = vmatpush1.msra.mxu0 %v124
      %202 = vmatprep.subr.mxu0 %v127
      %203 = vmatpush1.msra.mxu0 %v126
      %204 = vmatprep.subr.mxu0 %v129
      %205 = vmatpush1.msra.mxu0 %v128
      %206 = vmatprep.mubr.f32.mxu0 %v65
      %207 = vmatmul.mubr.f32.gmra.mrb[0].mxu0 %v64
      %v208 = vpop.f32.mrb[0].mxu0
      %v209 = vadd.f32 %v135, %v208
      %v210 = vpop.f32.mrb[0].mxu0
      %v211 = vadd.f32 %v139, %v210
      %212 = vdwg.mxu0
      %v213 = vmax.f32 %v209, 0.0
      %v214 = vmax.f32 %v211, 0.0
      %215 = vst [vmem:[#allocation2] sm:$0xff] %v213
      %216 = vst [vmem:[#allocation2 + $0x8] sm:$0xff] %v214
    $region37: #{tpu_custom_call.1} parent=1 // pred_fallthru
      _
    %v217 = vld [vmem:[#allocation2] sm:$0xff]
    %v218 = vld [vmem:[#allocation2 + $0x8] sm:$0xff]
    %v219 = vld [vmem:[#allocation8] sm:$0xff]
    %v220 = vld [vmem:[#allocation8 + $0x8] sm:$0xff]
    %v221 = vld [vmem:[#allocation8 + $0x10] sm:$0xff]
    %v222 = vld [vmem:[#allocation8 + $0x18] sm:$0xff]
    %v223 = vld [vmem:[#allocation8 + $0x20] sm:$0xff]
    %v224 = vld [vmem:[#allocation8 + $0x28] sm:$0xff]
    %v225 = vld [vmem:[#allocation8 + $0x30] sm:$0xff]
    %v226 = vld [vmem:[#allocation8 + $0x38] sm:$0xff]
    %v227 = vld [vmem:[#allocation8 + $0x40] sm:$0xff]
    %v228 = vld [vmem:[#allocation8 + $0x48] sm:$0xff]
    %v229 = vld [vmem:[#allocation8 + $0x50] sm:$0xff]
    %v230 = vld [vmem:[#allocation8 + $0x58] sm:$0xff]
    %v231 = vld [vmem:[#allocation8 + $0x60] sm:$0xff]
    %v232 = vld [vmem:[#allocation8 + $0x68] sm:$0xff]
    %v233 = vld [vmem:[#allocation8 + $0x70] sm:$0xff]
    %v234 = vld [vmem:[#allocation8 + $0x78] sm:$0xff]
    %v235 = vld [vmem:[#allocation8 + $0x80] sm:$0xff]
    %v236 = vld [vmem:[#allocation8 + $0x88] sm:$0xff]
    %v237 = vld [vmem:[#allocation8 + $0x90] sm:$0xff]
    %v238 = vld [vmem:[#allocation8 + $0x98] sm:$0xff]
    %v239 = vld [vmem:[#allocation8 + $0xa0] sm:$0xff]
    %v240 = vld [vmem:[#allocation8 + $0xa8] sm:$0xff]
    %v241 = vld [vmem:[#allocation8 + $0xb0] sm:$0xff]
    %v242 = vld [vmem:[#allocation8 + $0xb8] sm:$0xff]
    %v243 = vld [vmem:[#allocation8 + $0xc0] sm:$0xff]
    %v244 = vld [vmem:[#allocation8 + $0xc8] sm:$0xff]
    %v245 = vld [vmem:[#allocation8 + $0xd0] sm:$0xff]
    %v246 = vld [vmem:[#allocation8 + $0xd8] sm:$0xff]
    %v247 = vld [vmem:[#allocation8 + $0xe0] sm:$0xff]
    %v248 = vld [vmem:[#allocation8 + $0xe8] sm:$0xff]
    %v249 = vld [vmem:[#allocation8 + $0xf0] sm:$0xff]
    %v250 = vld [vmem:[#allocation8 + $0xf8] sm:$0xff]
    %v251 = vld [vmem:[#allocation8 + $0x100] sm:$0xff]
    %v252 = vld [vmem:[#allocation8 + $0x108] sm:$0xff]
    %v253 = vld [vmem:[#allocation8 + $0x110] sm:$0xff]
    %v254 = vld [vmem:[#allocation8 + $0x118] sm:$0xff]
    %v255 = vld [vmem:[#allocation8 + $0x120] sm:$0xff]
    %v256 = vld [vmem:[#allocation8 + $0x128] sm:$0xff]
    %v257 = vld [vmem:[#allocation8 + $0x130] sm:$0xff]
    %v258 = vld [vmem:[#allocation8 + $0x138] sm:$0xff]
    %v259 = vld [vmem:[#allocation8 + $0x140] sm:$0xff]
    %v260 = vld [vmem:[#allocation8 + $0x148] sm:$0xff]
    %v261 = vld [vmem:[#allocation8 + $0x150] sm:$0xff]
    %v262 = vld [vmem:[#allocation8 + $0x158] sm:$0xff]
    %v263 = vld [vmem:[#allocation8 + $0x160] sm:$0xff]
    %v264 = vld [vmem:[#allocation8 + $0x168] sm:$0xff]
    %v265 = vld [vmem:[#allocation8 + $0x170] sm:$0xff]
    %v266 = vld [vmem:[#allocation8 + $0x178] sm:$0xff]
    %v267 = vld [vmem:[#allocation8 + $0x180] sm:$0xff]
    %v268 = vld [vmem:[#allocation8 + $0x188] sm:$0xff]
    %v269 = vld [vmem:[#allocation8 + $0x190] sm:$0xff]
    %v270 = vld [vmem:[#allocation8 + $0x198] sm:$0xff]
    %v271 = vld [vmem:[#allocation8 + $0x1a0] sm:$0xff]
    %v272 = vld [vmem:[#allocation8 + $0x1a8] sm:$0xff]
    %v273 = vld [vmem:[#allocation8 + $0x1b0] sm:$0xff]
    %v274 = vld [vmem:[#allocation8 + $0x1b8] sm:$0xff]
    %v275 = vld [vmem:[#allocation8 + $0x1c0] sm:$0xff]
    %v276 = vld [vmem:[#allocation8 + $0x1c8] sm:$0xff]
    %v277 = vld [vmem:[#allocation8 + $0x1d0] sm:$0xff]
    %v278 = vld [vmem:[#allocation8 + $0x1d8] sm:$0xff]
    %v279 = vld [vmem:[#allocation8 + $0x1e0] sm:$0xff]
    %v280 = vld [vmem:[#allocation8 + $0x1e8] sm:$0xff]
    %v281 = vld [vmem:[#allocation8 + $0x1f0] sm:$0xff]
    %v282 = vld [vmem:[#allocation8 + $0x1f8] sm:$0xff]
    %v283 = vld [vmem:[%s4] sm:$0x3]
    %v285 = vlaneseq
    %v286 = vshrl.u32 %v285, 7
    %v287 = vsub.s32 0, %v286
    %v288 = vrot.slane %v283, %v287
    %v289 = vlaneseq
    %v290 = vshrl.u32 %v289, 7
    %v291 = vsub.s32 1, %v290
    %v292 = vrot.slane %v283, %v291
    %295 = vmatprep.subr.mxu0 %v220
    %296 = vmatpush1.msra.mxu0 %v219
    %297 = vmatprep.subr.mxu0 %v222
    %298 = vmatpush1.msra.mxu0 %v221
    %299 = vmatprep.subr.mxu0 %v224
    %300 = vmatpush1.msra.mxu0 %v223
    %301 = vmatprep.subr.mxu0 %v226
    %302 = vmatpush1.msra.mxu0 %v225
    %303 = vmatprep.subr.mxu0 %v228
    %304 = vmatpush1.msra.mxu0 %v227
    %305 = vmatprep.subr.mxu0 %v230
    %306 = vmatpush1.msra.mxu0 %v229
    %307 = vmatprep.subr.mxu0 %v232
    %308 = vmatpush1.msra.mxu0 %v231
    %309 = vmatprep.subr.mxu0 %v234
    %310 = vmatpush1.msra.mxu0 %v233
    %311 = vmatprep.subr.mxu0 %v236
    %312 = vmatpush1.msra.mxu0 %v235
    %313 = vmatprep.subr.mxu0 %v238
    %314 = vmatpush1.msra.mxu0 %v237
    %315 = vmatprep.subr.mxu0 %v240
    %316 = vmatpush1.msra.mxu0 %v239
    %317 = vmatprep.subr.mxu0 %v242
    %318 = vmatpush1.msra.mxu0 %v241
    %319 = vmatprep.subr.mxu0 %v244
    %320 = vmatpush1.msra.mxu0 %v243
    %321 = vmatprep.subr.mxu0 %v246
    %322 = vmatpush1.msra.mxu0 %v245
    %323 = vmatprep.subr.mxu0 %v248
    %324 = vmatpush1.msra.mxu0 %v247
    %325 = vmatprep.subr.mxu0 %v250
    %326 = vmatpush1.msra.mxu0 %v249
    %327 = vmatprep.subr.mxu0 %v252
    %328 = vmatpush1.msra.mxu0 %v251
    %329 = vmatprep.subr.mxu0 %v254
    %330 = vmatpush1.msra.mxu0 %v253
    %331 = vmatprep.subr.mxu0 %v256
    %332 = vmatpush1.msra.mxu0 %v255
    %333 = vmatprep.subr.mxu0 %v258
    %334 = vmatpush1.msra.mxu0 %v257
    %335 = vmatprep.subr.mxu0 %v260
    %336 = vmatpush1.msra.mxu0 %v259
    %337 = vmatprep.subr.mxu0 %v262
    %338 = vmatpush1.msra.mxu0 %v261
    %339 = vmatprep.subr.mxu0 %v264
    %340 = vmatpush1.msra.mxu0 %v263
    %341 = vmatprep.subr.mxu0 %v266
    %342 = vmatpush1.msra.mxu0 %v265
    %343 = vmatprep.subr.mxu0 %v268
    %344 = vmatpush1.msra.mxu0 %v267
    %345 = vmatprep.subr.mxu0 %v270
    %346 = vmatpush1.msra.mxu0 %v269
    %347 = vmatprep.subr.mxu0 %v272
    %348 = vmatpush1.msra.mxu0 %v271
    %349 = vmatprep.subr.mxu0 %v274
    %350 = vmatpush1.msra.mxu0 %v273
    %351 = vmatprep.subr.mxu0 %v276
    %352 = vmatpush1.msra.mxu0 %v275
    %353 = vmatprep.subr.mxu0 %v278
    %354 = vmatpush1.msra.mxu0 %v277
    %355 = vmatprep.subr.mxu0 %v280
    %356 = vmatpush1.msra.mxu0 %v279
    %357 = vmatprep.subr.mxu0 %v282
    %358 = vmatpush1.msra.mxu0 %v281
    %359 = vmatprep.mubr.f32.mxu0 %v218
    %360 = vmatmul.mubr.f32.gmra.mrb[0].mxu0 %v217
    %v361 = vpop.f32.mrb[0].mxu0
    %v362 = vadd.f32 %v288, %v361
    %v363 = vpop.f32.mrb[0].mxu0
    %v364 = vadd.f32 %v292, %v363
    %365 = vdwg.mxu0
    %366 = vst [vmem:[#allocation9] sm:$0xff] %v362
    %367 = vst [vmem:[#allocation9 + $0x8] sm:$0xff] %v364
    // Predicated region
    $region38: #{tpu_custom_call.1} parent=1 // pred_check
      _
    $region39: #{tpu_custom_call.1} parent=1 // pred_check_branch
      %369 = sbr.rel (0) target = $region41
    $region40: #{tpu_custom_call.1} parent=1 // pred_region
      %s371 = ssub.s32 256, 256
      %372 = vsyncadd [#allocation5], %s371
      %s374 = sshll.u32 [#allocation9], 4
      %s375 = int_to_ptr.vmem [resolvable:$true] %s374
      %377 = dma.vmem_to_hbm [thread:$0]  %s375, 256, %s5, [#allocation5]
    $region41: #{tpu_custom_call.1} parent=1 // pred_fallthru
      _
    // Predicated region
    $region42: #{tpu_custom_call.1} parent=1 // pred_check
      _
    $region43: #{tpu_custom_call.1} parent=1 // pred_check_branch
      %379 = sbr.rel (0) target = $region45
    $region44: #{tpu_custom_call.1} parent=1 // pred_region
      %380 = dma.done [#allocation5], 256
    $region45: #{tpu_custom_call.1} parent=1 // pred_fallthru
      _
    %381 = vsyncpa [#allocation4], 1
    %382 = vsyncpa [#allocation7], 1
    %383 = vsyncpa [#allocation5], 1

</llo_original>
